<compile_context>
chip_gen: v7x
topology: tpu7x:2x2x1
jax: 0.10.0
libtpu: 0.0.40
codegen_flags: <defaults>
</compile_context>

<pallas_src>
import functools

import jax
import jax.numpy as jnp
from jax.experimental import pallas as pl
from jax.experimental.pallas import tpu as pltpu


_VMEM_LIMIT_BYTES = 32 * 1024 * 1024     # explicit scoped-VMEM request
_BLOCK_BUDGET_BYTES = 12 * 1024 * 1024   # 2 x (in block) + 2 x (out block)


# ----------------------------- kernels --------------------------------------


def _movie_from_image_kernel(x_ref, o_ref, *, image_off, blank_frames):
    """4-D path. x_ref: (tb, td), o_ref: (tb, times, td)."""
    if image_off > 0:
        x = x_ref[...]                                        # (tb, td)
        o_ref[:, :image_off, :] = jnp.broadcast_to(
            x[:, None, :], (x.shape[0], image_off, x.shape[1]))
    if blank_frames > 0:
        o_ref[:, image_off:, :] = jnp.full(
            (o_ref.shape[0], blank_frames, o_ref.shape[2]), 0.5,
            dtype=o_ref.dtype)


def _blank_fill_kernel(x_hbm_ref, o_ref):
    """5-D path. o_ref: (bs, td) = one blank-frame lane tile.

    The input ref is only present because it is aliased to the output; it is
    never read (no HBM read traffic)."""
    del x_hbm_ref
    o_ref[...] = jnp.full(o_ref.shape, 0.5, dtype=o_ref.dtype)


# ----------------------------- tiling ----------------------------------------


def _round_down_128(n):
    return max(128, (n // 128) * 128)


def _pick_lane_tile(d, bytes_per_lane, *, min_steps=1):
    """Tile size along the flattened feature dim D.

    Always a multiple of 128 (lane-dense output; cdiv + masked writeback
    handles a ragged last tile), unless D itself is <= 128 in which case the
    full dim is used (always legal).  `bytes_per_lane` is the total buffer
    bytes per lane including double buffering.
    """
    if d <= 128:
        return d
    td = _round_down_128(_BLOCK_BUDGET_BYTES // max(int(bytes_per_lane), 1))
    if min_steps > 1:                      # keep >= min_steps grid steps
        td = min(td, _round_down_128(pl.cdiv(d, min_steps)))
    td = min(td, ((d + 127) // 128) * 128)  # never exceed (padded) D
    return td


# ----------------------------- wrapper ---------------------------------------


def make_movie(ims, *, times, image_off):
    """JAX/Pallas equivalent of MakeMovie(times, image_off)(ims).

    The 5-D path updates the buffer "in place" via input/output aliasing;
    donate the argument (jit(..., donate_argnums=0)) for true in-place.
    """
    if not 0 <= image_off <= times:
        raise ValueError(
            f"need 0 <= image_off <= times, got image_off={image_off}, "
            f"times={times}")
    shape = ims.shape
    blank_frames = times - image_off
    itemsize = ims.dtype.itemsize

    if ims.ndim == 4:
        bs, c, h, w = shape
        d = c * h * w
        x2 = ims.reshape(bs, d)                               # free reshape

        # Double-buffered in (bs, td) + out (bs, times, td) blocks; ask for
        # >= 2 lane steps so both v7x TensorCores get work.
        bytes_per_lane = 2 * (bs + bs * times) * itemsize
        td = _pick_lane_tile(d, bytes_per_lane, min_steps=2)
        # If even a 128-lane block overflows the budget, tile the batch too
        # (multiples of 8 keep the input block sublane-aligned).
        tb = bs
        if 2 * (tb + tb * times) * itemsize * td > _BLOCK_BUDGET_BYTES and bs > 8:
            tb = _BLOCK_BUDGET_BYTES // (2 * (1 + times) * itemsize * td)
            tb = min(bs, max(8, (tb // 8) * 8))

        kernel = functools.partial(_movie_from_image_kernel,
                                   image_off=image_off,
                                   blank_frames=blank_frames)
        out = pl.pallas_call(
            kernel,
            out_shape=jax.ShapeDtypeStruct((bs, times, d), ims.dtype),
            grid=(pl.cdiv(bs, tb), pl.cdiv(d, td)),
            in_specs=[pl.BlockSpec((tb, td), lambda b, j: (b, j))],
            out_specs=pl.BlockSpec((tb, times, td), lambda b, j: (b, 0, j)),
            compiler_params=pltpu.CompilerParams(
                dimension_semantics=("parallel", "parallel"),
                vmem_limit_bytes=_VMEM_LIMIT_BYTES),
        )(x2)
        return out.reshape(bs, times, c, h, w)

    elif ims.ndim == 5:
        if shape[1] != times:
            raise ValueError(
                f"T={times} but got input time dimension={shape[1]}")
        bs, t, c, h, w = shape
        d = c * h * w
        if blank_frames == 0:
            return ims                                        # nothing to blank
        x3 = ims.reshape(bs, t, d)                            # free reshape

        # Output-only traffic: only the blank tail frames are visited, and the
        # input is never DMA'd (pl.ANY + aliasing).  Out block = (bs, td).
        bytes_per_lane = 2 * bs * itemsize                    # dbl-buffered out
        td = _pick_lane_tile(d, bytes_per_lane,
                             min_steps=2 if blank_frames == 1 else 1)

        # TODO(synk): matching PyTorch's in-place mutation exactly requires the
        # caller to donate `ims`; without donation XLA inserts one copy to
        # honor the aliasing (still correct, just extra traffic).
        out = pl.pallas_call(
            _blank_fill_kernel,
            out_shape=jax.ShapeDtypeStruct((bs, t, d), ims.dtype),
            grid=(blank_frames, pl.cdiv(d, td)),
            in_specs=[pl.BlockSpec(memory_space=pl.ANY)],     # never read
            out_specs=pl.BlockSpec((bs, None, td),
                                   lambda f, j: (0, image_off + f, j)),
            input_output_aliases={0: 0},
            compiler_params=pltpu.CompilerParams(
                dimension_semantics=("parallel", "parallel"),
                vmem_limit_bytes=_VMEM_LIMIT_BYTES),
        )(x3)
        return out.reshape(shape)

    else:
        raise ValueError(
            "currently only (bs, C, H, W) or (bs, T, C, H, W) is supported, "
            f"but the input shape={shape}")


# ----------------------------- demo / test -----------------------------------


if __name__ == "__main__":
    key = jax.random.PRNGKey(0)
    k4, k5 = jax.random.split(key)

    times, image_off = 8, 3
    bs, c, h, w = 2, 4, 16, 16

    fn4 = jax.jit(functools.partial(make_movie, times=times,
                                    image_off=image_off))
    # 5-D path updates in place via aliasing; donate the input so no copy is
    # inserted (matches PyTorch's in-place semantics).
    fn5 = jax.jit(functools.partial(make_movie, times=times,
                                    image_off=image_off),
                  donate_argnums=(0,))

    # ---- 4-D path: (bs, C, H, W) -> (bs, times, C, H, W) ----
    ims4 = jax.random.uniform(k4, (bs, c, h, w), dtype=jnp.float32)
    out4 = jax.block_until_ready(fn4(ims4))
    assert out4.shape == (bs, times, c, h, w)
    ref4 = jnp.concatenate(
        [jnp.broadcast_to(ims4[:, None], (bs, image_off, c, h, w)),
         jnp.full((bs, times - image_off, c, h, w), 0.5, jnp.float32)], axis=1)
    assert bool(jnp.allclose(out4, ref4))

    # ---- 5-D path: (bs, T, C, H, W) -> (bs, T, C, H, W) ----
    ims5 = jax.random.uniform(k5, (bs, times, c, h, w), dtype=jnp.float32)
    ref5 = jax.block_until_ready(ims5.at[:, image_off:].set(0.5))
    out5 = jax.block_until_ready(fn5(ims5))        # ims5 is donated here
    assert out5.shape == (bs, times, c, h, w)
    assert bool(jnp.allclose(out5, ref5))

    print("KERNEL_OK")
</pallas_src>

<mosaic_0001>
module attributes {stable_mosaic.version = 11 : i64} {
  func.func @_movie_from_image_kernel(%arg0: i32, %arg1: i32, %arg2: memref<2x512xf32, #tpu.memory_space<vmem>>, %arg3: memref<2x8x512xf32, #tpu.memory_space<vmem>>) attributes {dimension_semantics = [#tpu.dimension_semantics<parallel>, #tpu.dimension_semantics<parallel>], iteration_bounds = array<i64: 1, 2>, scalar_prefetch = 0 : i64, scratch_operands = 0 : i64, tpu.core_type = #tpu.core_type<tc>, window_params = [{transform_indices = @transform_0, window_bounds = array<i64: 2, 512>}, {transform_indices = @transform_1, window_bounds = array<i64: 2, 8, 512>}]} {
    %c0 = arith.constant 0 : index
    %c0_0 = arith.constant 0 : index
    %0 = vector.load %arg2[%c0, %c0_0] : memref<2x512xf32, #tpu.memory_space<vmem>>, vector<2x512xf32>
    %1 = vector.shape_cast %0 : vector<2x512xf32> to vector<2x1x512xf32>
    %2 = vector.shape_cast %1 : vector<2x1x512xf32> to vector<2x1x512xf32>
    %3 = vector.broadcast %2 : vector<2x1x512xf32> to vector<2x3x512xf32>
    %c0_1 = arith.constant 0 : index
    %c0_2 = arith.constant 0 : index
    %c0_3 = arith.constant 0 : index
    %4 = vector.load %arg3[%c0_1, %c0_2, %c0_3] : memref<2x8x512xf32, #tpu.memory_space<vmem>>, vector<2x3x512xf32>
    tpu.vector_store %arg3[%c0_1, %c0_2, %c0_3], %3 {strides = array<i32>} : memref<2x8x512xf32, #tpu.memory_space<vmem>>, vector<2x3x512xf32>,
    %cst = arith.constant 5.000000e-01 : f32
    %5 = vector.broadcast %cst : f32 to vector<2x5x512xf32>
    %c0_4 = arith.constant 0 : index
    %c3 = arith.constant 3 : index
    %c0_5 = arith.constant 0 : index
    %6 = vector.load %arg3[%c0_4, %c3, %c0_5] : memref<2x8x512xf32, #tpu.memory_space<vmem>>, vector<2x5x512xf32>
    tpu.vector_store %arg3[%c0_4, %c3, %c0_5], %5 {strides = array<i32>} : memref<2x8x512xf32, #tpu.memory_space<vmem>>, vector<2x5x512xf32>,
    return
  }
  func.func @transform_0(%arg0: i32, %arg1: i32) -> (i32, i32) {
    %c0_i32 = arith.constant 0 : i32
    return %arg0, %arg1 : i32, i32
  }
  func.func @transform_1(%arg0: i32, %arg1: i32) -> (i32, i32, i32) {
    %c0_i32 = arith.constant 0 : i32
    %c0_i32_0 = arith.constant 0 : i32
    return %arg0, %c0_i32, %arg1 : i32, i32, i32
  }
}

</mosaic_0001>

<llo_original>
// kernel: make_movie.1
$region0: #{make_movie.1}
  #allocation0 [shape = 'u32[]', space=smem, size = 0x4, offset = 0x4, fixed_abs, tag = 'smem constant byte address 0x4 - core index']
  #allocation1 [shape = 'u32[144,128]{1,0:T(1,128)}', space=vmem, size = 0x12000, scoped, tag = 'internal scratch']
  %s0 = inlined_call_operand.vmem [shape: f32[2,1024], index: 0, kind: input, shape index: {}]
  %s1 = inlined_call_operand.vmem [shape: f32[2,8,1024], index: 1, kind: output, shape index: {}]
  %s2 = sld [smem:[#allocation0]]
  $region56: #{make_movie.1} parent=0
    _
  %s4 = ssub.s32 1, %s2
  %s5 = scalar_select 0, %s4, %s2
  $region1: #{make_movie.1} parent=0
    #allocation2 [shape = 'u8[65536]{0}', space=vmem, size = 0x10000, scoped, tag = 'output window, operand 0']
    loop: start=0, step=1, limit=4
    $region2: #{make_movie.1} parent=1 // loop_pre_header
      _
    $region3: #{make_movie.1} parent=1 // loop_header
      %s7 = sphi 0, %s11
      %p8 = scmp.ge.s32.totalorder %s7, 4
      %s14 = sphi 0, %s26
      %s15 = sphi 0, %s22
      %s16 = sphi 0, %s14
      %s17 = sphi 0, %s15
      %s18 = sphi 0, %s16
      %s19 = sphi 0, %s17
      %s31 = sphi 0, %s33
      %s34 = sphi 0, %s31
      %s35 = sphi 0, %s34
      %s51 = sphi 0, %s35
      %s59 = sphi 0, %s61
      %s62 = sphi 0, %s59
      %s63 = sphi 0, %s62
      %s79 = sphi 0, %s63
    $region4: #{make_movie.1} parent=1 // loop_header_branch
      %10 = sbr.rel (%p8) target = $region8
    $region5: #{make_movie.1} parent=1 // loop_body
      %s12 = ssub.s32 %s7, 1
      %s13 = ssub.s32 %s7, 2
      %s20 = sadd.s32 1, %s15
      %p21 = scmp.ge.s32.totalorder %s20, 2
      %s22 = scalar_select %p21, 0, %s20
      %s23 = sadd.s32 1, %s14
      %s24 = scalar_select %p21, %s23, %s14
      %p25 = scmp.ge.s32.totalorder %s24, 1
      %s26 = scalar_select %p25, 0, %s24
      %s27 = ssub.s32 %s14, %s26
      %s28 = ssub.s32 %s15, %s22
      %s29 = sor.u32 %s27, %s28
      %p30 = scmp.eq.s32.totalorder %s29, 0
      %s32 = sadd.s32 %s31, 1
      %s33 = scalar_select %p30, %s31, %s32
      %p36 = pneg %p30
      %p37 = scmp.eq.s32.totalorder %s7, 1
      %p38 = por %p36, %p37
      %p39 = scmp.ne.s32.totalorder %s31, %s34
      %p40 = scmp.eq.s32.totalorder %s7, 0
      %p41 = por %p39, %p40
      %p42 = scmp.ne.s32.totalorder %s31, %s34
      %p43 = scmp.eq.s32.totalorder %s12, 1
      %p44 = por %p42, %p43
      %p45 = scmp.ne.s32.totalorder %s34, %s35
      %p46 = scmp.eq.s32.totalorder %s12, 0
      %p47 = por %p45, %p46
      %p48 = scmp.ne.s32.totalorder %s34, %s35
      %p49 = scmp.eq.s32.totalorder %s13, 1
      %p50 = por %p48, %p49
      %p52 = scmp.ne.s32.totalorder %s35, %s51
      %p53 = scmp.eq.s32.totalorder %s13, 0
      %p54 = por %p52, %p53
      %s55 = ssub.s32 %s14, %s26
      %s56 = ssub.s32 %s15, %s22
      %s57 = sor.u32 %s55, %s56
      %p58 = scmp.eq.s32.totalorder %s57, 0
      %s60 = sadd.s32 %s59, 1
      %s61 = scalar_select %p58, %s59, %s60
      %p64 = pneg %p58
      %p65 = scmp.eq.s32.totalorder %s7, 1
      %p66 = por %p64, %p65
      %p67 = scmp.ne.s32.totalorder %s59, %s62
      %p68 = scmp.eq.s32.totalorder %s7, 0
      %p69 = por %p67, %p68
      %p70 = scmp.ne.s32.totalorder %s59, %s62
      %p71 = scmp.eq.s32.totalorder %s12, 1
      %p72 = por %p70, %p71
      %p73 = scmp.ne.s32.totalorder %s62, %s63
      %p74 = scmp.eq.s32.totalorder %s12, 0
      %p75 = por %p73, %p74
      %p76 = scmp.ne.s32.totalorder %s62, %s63
      %p77 = scmp.eq.s32.totalorder %s13, 1
      %p78 = por %p76, %p77
      %p80 = scmp.ne.s32.totalorder %s63, %s79
      %p81 = scmp.eq.s32.totalorder %s13, 0
      %p82 = por %p80, %p81
      %p83 = scmp.le.s32.totalorder 1, %s7
      %p84 = scmp.lt.s32.totalorder %s7, 3
      %p85 = pnand %p83, %p84
      %p86 = pneg %p85
      // Predicated region
      $region9: #{make_movie.1} parent=5 // pred_check
        _
      $region10: #{make_movie.1} parent=5 // pred_check_branch
        %88 = sbr.rel (%p85) target = $region12
      $region11: #{make_movie.1} parent=5 // pred_region
        %s89 = ssub.s32 %s7, 1
      $region12: #{make_movie.1} parent=5 // pred_fallthru
        _
      %p90 = scmp.lt.s32.totalorder %s7, 2
      // Predicated region
      $region13: #{make_movie.1} parent=5 // pred_check
        %p91 = pneg %p90
      $region14: #{make_movie.1} parent=5 // pred_check_branch
        %93 = sbr.rel (%p91) target = $region16
      $region15: #{make_movie.1} parent=5 // pred_region
        // Predicated region
        $region17: #{make_movie.1} parent=15 // pred_check
          %p94 = pneg %p41
        $region18: #{make_movie.1} parent=15 // pred_check_branch
          %96 = sbr.rel (%p94) target = $region20
        $region19: #{make_movie.1} parent=15 // pred_region
          %s97 = smul.u32 4, %s15
          %p98 = scmp.lt.s32.totalorder %s14, 0
          %s99 = scalar_select %p98, %s14, 0
          %p100 = scmp.lt.s32.totalorder %s97, 7
          %s101 = scalar_select %p100, %s97, 7
          %s102 = smul.addr %s99, 8
          %s103 = sadd.s32 %s101, %s102
          %s104 = smul.addr %s103, 2
          %s105 = scalar_lea.vmem %s0, %s104
          %s106 = smul.u32 4, %s15
        $region20: #{make_movie.1} parent=15 // pred_fallthru
          _
      $region16: #{make_movie.1} parent=5 // pred_fallthru
        _
      %p107 = scmp.le.s32.totalorder 1, %s7
      %p108 = scmp.lt.s32.totalorder %s7, 3
      %p109 = pnand %p107, %p108
      %p110 = pneg %p109
      // Predicated region
      $region21: #{make_movie.1} parent=5 // pred_check
        _
      $region22: #{make_movie.1} parent=5 // pred_check_branch
        %112 = sbr.rel (%p109) target = $region24
      $region23: #{make_movie.1} parent=5 // pred_region
        %s113 = ssub.s32 %s7, 1
        %s114 = smul.u32 4, %s17
        %p115 = scmp.lt.s32.totalorder %s16, 0
        %s116 = scalar_select %p115, %s16, 0
        %p117 = scmp.lt.s32.totalorder %s114, 7
        %s118 = scalar_select %p117, %s114, 7
        %s119 = smul.addr %s116, 8
        %s120 = sadd.s32 %s118, %s119
        %s121 = smul.addr %s120, 2
        %s122 = scalar_lea.vmem %s0, %s121
        %p123 = pneg %p47
        %p124 = pneg %p44
        %p125 = pneg %p75
        %p126 = pneg %p72
        %s127 = sand.u32 %s62, 1
        %s128 = sand.u32 %s62, 1
        %s129 = smul.addr %s128, 64
        %s130 = scalar_lea.vmem [#allocation2], %s129
        %s131 = smul.u32 4, %s17
        %p132 = scmp.lt.s32.totalorder %s16, 0
        %s133 = scalar_select %p132, %s16, 0
        %p134 = scmp.lt.s32.totalorder %s131, 7
        %s135 = scalar_select %p134, %s131, 7
        %s136 = smul.addr %s133, 8
        %s137 = sadd.s32 %s135, %s136
        %s138 = smul.addr %s137, 2
        %s139 = scalar_lea.vmem %s0, %s138
        %s140 = smul.u32 4, %s17
        %s141 = smul.u32 2, %s16
        %s142 = smul.u32 4, %s17
        %v143 = vld [vmem:[%s139] sm:$0xff]
        %v146 = vunpack.c.l.s4 1966171168
        %v147 = vunpack.c.0.s8 %v146
        %v148 = vlaneseq
        %v149 = vshrl.u32 %v148, 7
        %v150 = vsub.s32 %v147, %v149
        %v151 = vrot.slane %v143, %v150
        %v152 = vcombine.high %v151, %v151
        %v153 = vlaneseq
        %v154 = vshrl.u32 %v153, 7
        %v155 = vsub.s32 0, %v154
        %v156 = vrot.slane %v151, %v155
        %v157 = vlaneseq
        %v158 = vshrl.u32 %v157, 7
        %v159 = vsub.s32 1, %v158
        %v160 = vrot.slane %v151, %v159
        %v161 = vlaneseq
        %v162 = vshrl.u32 %v161, 7
        %v163 = vsub.s32 2, %v162
        %v164 = vrot.slane %v151, %v163
        %v165 = vlaneseq
        %v166 = vshrl.u32 %v165, 7
        %v167 = vsub.s32 3, %v166
        %v168 = vrot.slane %v151, %v167
        %v169 = vlaneseq
        %v170 = vshrl.u32 %v169, 7
        %v171 = vsub.s32 0, %v170
        %v172 = vrot.slane %v152, %v171
        %v173 = vlaneseq
        %v174 = vshrl.u32 %v173, 7
        %v175 = vsub.s32 1, %v174
        %v176 = vrot.slane %v152, %v175
        %v177 = vlaneseq
        %v178 = vshrl.u32 %v177, 7
        %v179 = vsub.s32 2, %v178
        %v180 = vrot.slane %v152, %v179
        %v181 = vlaneseq
        %v182 = vshrl.u32 %v181, 7
        %v183 = vsub.s32 3, %v182
        %v184 = vrot.slane %v152, %v183
        %193 = vst [vmem:[%s130] sm:$0x7] %v156
        %194 = vst [vmem:[%s130 + $0x8] sm:$0x7] %v160
        %195 = vst [vmem:[%s130 + $0x10] sm:$0x7] %v164
        %196 = vst [vmem:[%s130 + $0x18] sm:$0x7] %v168
        %197 = vst [vmem:[%s130 + $0x20] sm:$0x7] %v172
        %198 = vst [vmem:[%s130 + $0x28] sm:$0x7] %v176
        %199 = vst [vmem:[%s130 + $0x30] sm:$0x7] %v180
        %200 = vst [vmem:[%s130 + $0x38] sm:$0x7] %v184
        %201 = vst [vmem:[%s130] sm:$0xf8] 0.5
        %202 = vst [vmem:[%s130 + $0x8] sm:$0xf8] 0.5
        %203 = vst [vmem:[%s130 + $0x10] sm:$0xf8] 0.5
        %204 = vst [vmem:[%s130 + $0x18] sm:$0xf8] 0.5
        %205 = vst [vmem:[%s130 + $0x20] sm:$0xf8] 0.5
        %206 = vst [vmem:[%s130 + $0x28] sm:$0xf8] 0.5
        %207 = vst [vmem:[%s130 + $0x30] sm:$0xf8] 0.5
        %208 = vst [vmem:[%s130 + $0x38] sm:$0xf8] 0.5
        %s209 = sand.u32 %s62, 1
        %s210 = sand.u32 %s62, 1
        %s211 = smul.addr %s210, 64
        %s212 = scalar_lea.vmem [#allocation2], %s211
        // Predicated region
        $region25: #{make_movie.1} parent=23 // pred_check
          %p213 = pneg %p72
        $region26: #{make_movie.1} parent=23 // pred_check_branch
          %215 = sbr.rel (%p213) target = $region28
        $region27: #{make_movie.1} parent=23 // pred_region
          %s216 = smul.u32 2, %s16
          %s217 = smul.u32 4, %s17
          %s218 = smul.addr %s216, 8
          %s219 = sadd.s32 %s217, %s218
          %s220 = smul.addr %s219, 8
          %s221 = scalar_lea.vmem %s1, %s220
          // Predicated region
          $region29: #{make_movie.1} parent=27 // pred_check
            _
          $region30: #{make_movie.1} parent=27 // pred_check_branch
            %223 = sbr.rel (0) target = $region32
          $region31: #{make_movie.1} parent=27 // pred_region
            // Predicated region
            $region33: #{make_movie.1} parent=31 // pred_check
              _
            $region34: #{make_movie.1} parent=31 // pred_check_branch
              %225 = sbr.rel (0) target = $region36
            $region35: #{make_movie.1} parent=31 // pred_region
              loop: start=0, step=1, limit=1
              $region37: #{make_movie.1} parent=35 // loop_pre_header
                _
              $region38: #{make_movie.1} parent=35 // loop_header
                %s227 = sphi 0, %s231
                %p228 = scmp.ge.s32.totalorder %s227, 1
                %s232 = sphi %s212, %s212
                %s233 = sphi %s221, %s221
              $region39: #{make_movie.1} parent=35 // loop_header_branch
                %230 = sbr.rel (%p228) target = $region43
              $region40: #{make_movie.1} parent=35 // loop_body
                %v234 = vld [vmem:[%s232] sm:$0xff]
                %235 = vst [vmem:[%s233] sm:$0xff] %v234
                %v236 = vld [vmem:[%s232 + $0x8] sm:$0xff]
                %237 = vst [vmem:[%s233 + $0x8] sm:$0xff] %v236
                %v238 = vld [vmem:[%s232 + $0x10] sm:$0xff]
                %239 = vst [vmem:[%s233 + $0x10] sm:$0xff] %v238
                %v240 = vld [vmem:[%s232 + $0x18] sm:$0xff]
                %241 = vst [vmem:[%s233 + $0x18] sm:$0xff] %v240
                %v242 = vld [vmem:[%s232 + $0x20] sm:$0xff]
                %243 = vst [vmem:[%s233 + $0x40] sm:$0xff] %v242
                %v244 = vld [vmem:[%s232 + $0x28] sm:$0xff]
                %245 = vst [vmem:[%s233 + $0x48] sm:$0xff] %v244
                %v246 = vld [vmem:[%s232 + $0x30] sm:$0xff]
                %247 = vst [vmem:[%s233 + $0x50] sm:$0xff] %v246
                %v248 = vld [vmem:[%s232 + $0x38] sm:$0xff]
                %249 = vst [vmem:[%s233 + $0x58] sm:$0xff] %v248
              $region41: #{make_movie.1} parent=35 // loop_footer
                %s231 = sadd.s32 1, %s227
              $region42: #{make_movie.1} parent=35 // loop_footer_branch
                %226 = sbr.rel target = $region38
              $region43: #{make_movie.1} parent=35 // loop_exit
                _
            $region36: #{make_movie.1} parent=31 // pred_fallthru
              _
            // Predicated region
            $region44: #{make_movie.1} parent=31 // pred_check
              _
            $region45: #{make_movie.1} parent=31 // pred_check_branch
              %251 = sbr.rel target = $region47
            $region46: #{make_movie.1} parent=31 // pred_region
              _
            $region47: #{make_movie.1} parent=31 // pred_fallthru
              _
          $region32: #{make_movie.1} parent=27 // pred_fallthru
            _
          %252 = vnop
        $region28: #{make_movie.1} parent=23 // pred_fallthru
          _
      $region24: #{make_movie.1} parent=5 // pred_fallthru
        _
      %p253 = scmp.le.s32.totalorder 2, %s7
      // Predicated region
      $region48: #{make_movie.1} parent=5 // pred_check
        %p254 = pneg %p253
      $region49: #{make_movie.1} parent=5 // pred_check_branch
        %256 = sbr.rel (%p254) target = $region51
      $region50: #{make_movie.1} parent=5 // pred_region
        %s257 = ssub.s32 %s7, 2
        // Predicated region
        $region52: #{make_movie.1} parent=50 // pred_check
          %p258 = pneg %p78
        $region53: #{make_movie.1} parent=50 // pred_check_branch
          %260 = sbr.rel (%p258) target = $region55
        $region54: #{make_movie.1} parent=50 // pred_region
          %s261 = sand.u32 %s63, 1
          %s262 = sand.u32 %s63, 1
          %s263 = smul.addr %s262, 64
          %s264 = scalar_lea.vmem [#allocation2], %s263
        $region55: #{make_movie.1} parent=50 // pred_fallthru
          _
      $region51: #{make_movie.1} parent=5 // pred_fallthru
        _
    $region6: #{make_movie.1} parent=1 // loop_footer
      %s11 = sadd.s32 1, %s7
    $region7: #{make_movie.1} parent=1 // loop_footer_branch
      %6 = sbr.rel target = $region3
    $region8: #{make_movie.1} parent=1 // loop_exit
      _

</llo_original>
